<compile_context>
chip_gen: v7x
topology: tpu7x:2x2x1
jax: 0.10.0
libtpu: 0.0.40
codegen_flags: <defaults>
</compile_context>

<pallas_src>
import functools

import jax
import jax.numpy as jnp
from jax import lax
from jax.experimental import pallas as pl
from jax.experimental.pallas import tpu as pltpu


NUM_RESBLOCKS = 16
NUM_UPBLOCKS = 2                      # log2(upscale_factor=4)
_VMEM_LIMIT = 48 * 1024 * 1024        # fits v7x (64 MiB physical) with headroom


# ----------------------------------------------------------------------------
# In-kernel helpers (operate on VALUES, not refs)
# ----------------------------------------------------------------------------
def _pad_hw(x, pad):
    """Zero-pad a (H, W, C) value by `pad` rows/cols on each side."""
    if pad == 0:
        return x
    H, W, C = x.shape
    zr = jnp.zeros((pad, W, C), x.dtype)
    x = jnp.concatenate([zr, x, zr], axis=0)
    zc = jnp.zeros((H + 2 * pad, pad, C), x.dtype)
    return jnp.concatenate([zc, x, zc], axis=1)


def _conv_accum(src, w_ref, H, W, K, Cout):
    """Direct conv as K fat matmuls (kw taps fused into the contraction).

    src:   (H+K-1, W+K-1, Cin) zero-padded value (bf16)
    w_ref: (K, K*Cin, Cout) weight ref, w[kh, kw*Cin + ci, co]
    returns (H*W, Cout) float32 accumulator.
    """
    Cin = src.shape[-1]
    if K > 1:
        # xcat[h, w, kw*Cin + ci] = src[h, w + kw, ci]
        xcat = jnp.concatenate([src[:, kw:kw + W, :] for kw in range(K)], axis=-1)
    else:
        xcat = src
    acc = jnp.zeros((H * W, Cout), jnp.float32)
    for kh in range(K):
        acc = acc + jnp.dot(xcat[kh:kh + H].reshape(H * W, K * Cin), w_ref[kh],
                            preferred_element_type=jnp.float32)
    return acc


# ----------------------------------------------------------------------------
# Generic fused conv (+bias [+PReLU] [+tanh]) kernel
# ----------------------------------------------------------------------------
_CONV_CACHE = {}


def _get_conv_call(N, H, W, Cin, Cout, K, prelu, tanh, out_dtype):
    key = (N, H, W, Cin, Cout, K, prelu, tanh, jnp.dtype(out_dtype).name)
    if key in _CONV_CACHE:
        return _CONV_CACHE[key]
    pad = K // 2

    def kernel(*refs):
        it = iter(refs)
        x_ref = next(it)                       # (H, W, Cin)   bf16 (batch squeezed)
        w_ref = next(it)                       # (K, K*Cin, Cout) bf16
        b_ref = next(it)                       # (1, Cout)     f32
        a_ref = next(it) if prelu else None    # (1, Cout)     f32 PReLU alpha
        o_ref = next(it)                       # (H, W, Cout)

        src = _pad_hw(x_ref[...], pad)                       # in-kernel halo
        acc = _conv_accum(src, w_ref, H, W, K, Cout) + b_ref[...]
        if prelu:
            a = a_ref[...]
            acc = jnp.where(acc >= 0.0, acc, acc * a)
        out = acc.reshape(H, W, Cout)
        if tanh:
            out = jnp.tanh(out)
        o_ref[...] = out.astype(o_ref.dtype)

    in_specs = [
        pl.BlockSpec((None, H, W, Cin), lambda b: (b, 0, 0, 0)),
        pl.BlockSpec((K, K * Cin, Cout), lambda b: (0, 0, 0)),
        pl.BlockSpec((1, Cout), lambda b: (0, 0)),
    ]
    if prelu:
        in_specs.append(pl.BlockSpec((1, Cout), lambda b: (0, 0)))

    call = pl.pallas_call(
        kernel,
        out_shape=jax.ShapeDtypeStruct((N, H, W, Cout), out_dtype),
        grid=(N,),
        in_specs=in_specs,
        out_specs=pl.BlockSpec((None, H, W, Cout), lambda b: (b, 0, 0, 0)),
        compiler_params=pltpu.CompilerParams(
            dimension_semantics=("parallel",),   # batch -> both TCs on v7x
            vmem_limit_bytes=_VMEM_LIMIT,
        ),
    )
    _CONV_CACHE[key] = call
    return call


def conv_layer(x, wcat, b, *, K, alpha=None, tanh=False, out_dtype=jnp.bfloat16):
    """'same' conv. x: (N,H,W,Cin), wcat: (K, K*Cin, Cout) bf16, b: (Cout,)."""
    N, H, W, Cin = x.shape
    Cout = wcat.shape[-1]
    call = _get_conv_call(N, H, W, Cin, Cout, K, alpha is not None, tanh, out_dtype)
    args = [x.astype(jnp.bfloat16), wcat, b.reshape(1, Cout).astype(jnp.float32)]
    if alpha is not None:
        args.append(alpha.reshape(1, Cout).astype(jnp.float32))
    return call(*args)


# ----------------------------------------------------------------------------
# Fused residual trunk: 16 shared-weight ResidualBlocks + conv2/BN + global skip
# ----------------------------------------------------------------------------
_TRUNK_CACHE = {}


def _get_trunk_call(N, H, W, C, n_blocks):
    key = (N, H, W, C, n_blocks)
    if key in _TRUNK_CACHE:
        return _TRUNK_CACHE[key]

    def kernel(x_ref, w1_ref, b1_ref, a1_ref, w2_ref, b2_ref,
               wc_ref, bc_ref, o_ref):
        # Trunk input == `identity` (post-conv1 PReLU); keep the residual chain
        # in f32, feed the MXU in bf16.
        x0 = x_ref[...].astype(jnp.float32)               # (H, W, C)

        def conv3x3(act_f32, w_ref):
            src = _pad_hw(act_f32.astype(jnp.bfloat16), 1)
            return _conv_accum(src, w_ref, H, W, 3, C)    # (H*W, C) f32

        def block(_, act):
            h = conv3x3(act, w1_ref) + b1_ref[...]        # conv1 + folded bn1
            h = jnp.where(h >= 0.0, h, h * a1_ref[...])   # PReLU
            h2 = conv3x3(h.reshape(H, W, C), w2_ref) + b2_ref[...]  # conv2 + bn2
            return act + h2.reshape(H, W, C)              # block skip

        act = lax.fori_loop(0, n_blocks, block, x0)

        # trailing conv2 + folded BN + skip from identity (all fused here too)
        out = conv3x3(act, wc_ref) + bc_ref[...]
        out = out.reshape(H, W, C) + x0
        o_ref[...] = out.astype(o_ref.dtype)

    call = pl.pallas_call(
        kernel,
        out_shape=jax.ShapeDtypeStruct((N, H, W, C), jnp.bfloat16),
        grid=(N,),
        in_specs=[
            pl.BlockSpec((None, H, W, C), lambda b: (b, 0, 0, 0)),
            pl.BlockSpec((3, 3 * C, C), lambda b: (0, 0, 0)),   # res conv1 (kw-cat)
            pl.BlockSpec((1, C), lambda b: (0, 0)),             # res b1
            pl.BlockSpec((1, C), lambda b: (0, 0)),             # res PReLU alpha
            pl.BlockSpec((3, 3 * C, C), lambda b: (0, 0, 0)),   # res conv2 (kw-cat)
            pl.BlockSpec((1, C), lambda b: (0, 0)),             # res b2
            pl.BlockSpec((3, 3 * C, C), lambda b: (0, 0, 0)),   # trunk conv2 (kw-cat)
            pl.BlockSpec((1, C), lambda b: (0, 0)),             # trunk conv2 bias
        ],
        out_specs=pl.BlockSpec((None, H, W, C), lambda b: (b, 0, 0, 0)),
        compiler_params=pltpu.CompilerParams(
            dimension_semantics=("parallel",),
            vmem_limit_bytes=_VMEM_LIMIT,
        ),
    )
    _TRUNK_CACHE[key] = call
    return call


def residual_trunk(x, kp):
    N, H, W, C = x.shape
    call = _get_trunk_call(N, H, W, C, NUM_RESBLOCKS)
    r1 = lambda a: a.reshape(1, -1).astype(jnp.float32)
    return call(x.astype(jnp.bfloat16),
                kp["rw1"], r1(kp["rb1"]), r1(kp["ra"]),
                kp["rw2"], r1(kp["rb2"]),
                kp["wc2"], r1(kp["bc2"]))


# ----------------------------------------------------------------------------
# Wrapper glue: layouts, im2col, BN folding, pixel shuffle
# ----------------------------------------------------------------------------
def kw_concat(w_oihw):
    """OIHW -> (K, K*Cin, Cout) with index [kh, kw*Cin + ci, co]."""
    Cout, Cin, K, _ = w_oihw.shape
    w = jnp.transpose(w_oihw, (2, 3, 1, 0))        # (kh, kw, ci, co)
    return w.reshape(K, K * Cin, Cout)


def im2col(x, K):
    """'same' im2col. x: (N,H,W,C) -> (N,H,W,K*K*C), channel (kh*K+kw)*C + c."""
    N, H, W, C = x.shape
    pad = K // 2
    xp = jnp.pad(x, ((0, 0), (pad, pad), (pad, pad), (0, 0)))
    cols = [lax.slice(xp, (0, kh, kw, 0), (N, kh + H, kw + W, C))
            for kh in range(K) for kw in range(K)]
    return jnp.concatenate(cols, axis=-1)


def fold_bn(w_oihw, b, bn, eps=1e-5):
    # Fold eval-mode BatchNorm (running stats) into the preceding conv.
    # TODO(synk): training-mode BN (batch statistics) is not computed; eval-mode
    # semantics with deterministic synthetic running stats are used instead.
    scale = bn["gamma"] / jnp.sqrt(bn["var"] + eps)
    return w_oihw * scale[:, None, None, None], (b - bn["mean"]) * scale + bn["beta"]


def pixel_shuffle_nhwc(x, r):
    # NHWC equivalent of torch.nn.PixelShuffle(r): channel k = c*r*r + i*r + j.
    N, H, W, C = x.shape
    Co = C // (r * r)
    x = x.reshape(N, H, W, Co, r, r)
    x = jnp.transpose(x, (0, 1, 4, 2, 5, 3))
    return x.reshape(N, H * r, W * r, Co)


# ----------------------------------------------------------------------------
# Parameters (deterministic, synthetic) + kernel-ready preprocessing
# ----------------------------------------------------------------------------
def _bn_init(key, c):
    k1, k2, k3, k4 = jax.random.split(key, 4)
    return dict(
        gamma=1.0 + 0.1 * jax.random.normal(k1, (c,), jnp.float32),
        beta=0.1 * jax.random.normal(k2, (c,), jnp.float32),
        mean=0.1 * jax.random.normal(k3, (c,), jnp.float32),
        var=0.5 + jax.random.uniform(k4, (c,), jnp.float32),
    )


def init_params(key):
    ks = jax.random.split(key, 16)
    w = lambda k, s: 0.05 * jax.random.normal(k, s, jnp.float32)
    p = {}
    p["w1"], p["b1"] = w(ks[0], (64, 3, 9, 9)), w(ks[1], (64,))
    p["a1"] = jnp.full((64,), 0.25, jnp.float32)
    # residual block (SHARED by all 16 blocks, as in the PyTorch module)
    p["rw1"], p["rb1"] = w(ks[2], (64, 64, 3, 3)), w(ks[3], (64,))
    p["rbn1"] = _bn_init(ks[4], 64)
    p["ra"] = jnp.full((64,), 0.25, jnp.float32)
    p["rw2"], p["rb2"] = w(ks[5], (64, 64, 3, 3)), w(ks[6], (64,))
    p["rbn2"] = _bn_init(ks[7], 64)
    p["w2"], p["b2"] = w(ks[8], (64, 64, 3, 3)), w(ks[9], (64,))
    p["bn"] = _bn_init(ks[10], 64)
    # upsample block (SHARED by both upblocks)
    p["wu"], p["bu"] = w(ks[11], (256, 64, 3, 3)), w(ks[12], (256,))
    p["au"] = jnp.full((64,), 0.25, jnp.float32)
    p["w3"], p["b3"] = w(ks[13], (3, 64, 9, 9)), w(ks[14], (3,))
    return p


def prepare_params(p):
    """Fold BN, kw-concat + bf16-cast weights, pad conv3 Cout to 128."""
    bf = lambda a: a.astype(jnp.bfloat16)
    kp = {}
    # conv1: full im2col weight (1, 9*9*3, 64), index (kh*9+kw)*3 + ci
    kp["w1"] = bf(jnp.transpose(p["w1"], (2, 3, 1, 0)).reshape(1, 9 * 9 * 3, 64))
    kp["b1"], kp["a1"] = p["b1"], p["a1"]
    # residual trunk (BN folded into convs)
    rw1, rb1 = fold_bn(p["rw1"], p["rb1"], p["rbn1"])
    rw2, rb2 = fold_bn(p["rw2"], p["rb2"], p["rbn2"])
    kp["rw1"], kp["rb1"] = bf(kw_concat(rw1)), rb1
    kp["rw2"], kp["rb2"] = bf(kw_concat(rw2)), rb2
    kp["ra"] = p["ra"]
    wc2, bc2 = fold_bn(p["w2"], p["b2"], p["bn"])
    kp["wc2"], kp["bc2"] = bf(kw_concat(wc2)), bc2
    # upsample (shared); PReLU(64) commutes with PixelShuffle -> alpha repeated x4
    kp["wu"], kp["bu"] = bf(kw_concat(p["wu"])), p["bu"]
    kp["au4"] = jnp.repeat(p["au"], 4)
    # conv3: pad Cout 3 -> 128 for lane-dense output stores
    w3 = kw_concat(p["w3"])                                 # (9, 576, 3)
    kp["w3"] = bf(jnp.pad(w3, ((0, 0), (0, 0), (0, 125))))
    kp["b3"] = jnp.pad(p["b3"], (0, 125))
    return kp


# ----------------------------------------------------------------------------
# Generator forward
# ----------------------------------------------------------------------------
def generator_forward(x_nchw, kp):
    x = jnp.transpose(x_nchw, (0, 2, 3, 1)).astype(jnp.bfloat16)   # NHWC bf16

    # conv1 (9x9, Cin=3): lane-dense im2col + single fat matmul + PReLU
    patches = im2col(x, 9)                                         # (N,H,W,243)
    out = conv_layer(patches, kp["w1"], kp["b1"], K=1, alpha=kp["a1"])

    # 16 shared-weight residual blocks + conv2/BN + global skip — one fused kernel
    out = residual_trunk(out, kp)

    # 2 shared-weight upsample blocks: conv 64->256 (+PReLU pre-shuffle) + shuffle
    for _ in range(NUM_UPBLOCKS):
        t = conv_layer(out, kp["wu"], kp["bu"], K=3, alpha=kp["au4"])
        out = pixel_shuffle_nhwc(t, 2)

    # conv3 (9x9) + tanh; Cout padded to 128 in-kernel, slice real channels here
    y = conv_layer(out, kp["w3"], kp["b3"], K=9, tanh=True, out_dtype=jnp.float32)
    y = y[..., :3]
    return jnp.transpose(y, (0, 3, 1, 2))                          # NCHW f32


# ----------------------------------------------------------------------------
if __name__ == "__main__":
    N, H, W = 2, 16, 16
    x_nchw = jax.random.normal(jax.random.PRNGKey(0), (N, 3, H, W), jnp.float32)
    raw = init_params(jax.random.PRNGKey(1))
    kp = prepare_params(raw)

    dn = ("NHWC", "HWIO", "NHWC")
    x_nhwc = jnp.transpose(x_nchw, (0, 2, 3, 1)).astype(jnp.bfloat16)

    # --- sanity check 1: conv1 path (im2col + K=1 fat matmul) vs XLA conv ---
    y_p = conv_layer(im2col(x_nhwc, 9), kp["w1"], kp["b1"], K=1,
                     out_dtype=jnp.float32)
    w1h = jnp.transpose(raw["w1"], (2, 3, 1, 0)).astype(jnp.bfloat16)
    y_r = lax.conv_general_dilated(
        x_nhwc.astype(jnp.float32), w1h.astype(jnp.float32), (1, 1), "SAME",
        dimension_numbers=dn, precision=lax.Precision.HIGHEST) + raw["b1"]
    assert jnp.allclose(y_p, y_r, rtol=1e-2, atol=1e-2), "conv1 (im2col) mismatch"

    # --- sanity check 2: generic kw-fused K=3 path vs XLA conv ---
    t = jax.random.normal(jax.random.PRNGKey(2), (N, H, W, 64),
                          jnp.float32).astype(jnp.bfloat16)
    y_p = conv_layer(t, kp["wu"], kp["bu"], K=3, out_dtype=jnp.float32)
    wuh = jnp.transpose(raw["wu"], (2, 3, 1, 0)).astype(jnp.bfloat16)
    y_r = lax.conv_general_dilated(
        t.astype(jnp.float32), wuh.astype(jnp.float32), (1, 1), "SAME",
        dimension_numbers=dn, precision=lax.Precision.HIGHEST) + raw["bu"]
    assert jnp.allclose(y_p, y_r, rtol=1e-2, atol=1e-2), "kw-fused conv mismatch"

    # --- full forward ---
    fwd = jax.jit(functools.partial(generator_forward, kp=kp))
    out = fwd(x_nchw)
    jax.block_until_ready(out)
    assert out.shape == (N, 3, H * 4, W * 4), out.shape
    assert bool(jnp.all(jnp.isfinite(out)))
    assert bool(jnp.all(jnp.abs(out) <= 1.0))   # tanh range
    print("KERNEL_OK")
</pallas_src>

<mosaic_0001>
module attributes {stable_mosaic.version = 11 : i64} {
  func.func @kernel(%arg0: i32, %arg1: memref<1x16x16x243xbf16, #tpu.memory_space<vmem>>, %arg2: memref<1x243x64xbf16, #tpu.memory_space<vmem>>, %arg3: memref<1x64xf32, #tpu.memory_space<vmem>>, %arg4: memref<1x16x16x64xf32, #tpu.memory_space<vmem>>) attributes {dimension_semantics = [#tpu.dimension_semantics<parallel>], iteration_bounds = array<i64: 2>, scalar_prefetch = 0 : i64, scratch_operands = 0 : i64, tpu.core_type = #tpu.core_type<tc>, window_params = [{transform_indices = @transform_0, window_bounds = array<i64: 1, 16, 16, 243>}, {pipeline_mode = #tpu.pipeline_mode<synchronous>, transform_indices = @transform_1, window_bounds = array<i64: 1, 243, 64>}, {pipeline_mode = #tpu.pipeline_mode<synchronous>, transform_indices = @transform_2, window_bounds = array<i64: 1, 64>}, {transform_indices = @transform_3, window_bounds = array<i64: 1, 16, 16, 64>}]} {
    %c0 = arith.constant 0 : index
    %c0_0 = arith.constant 0 : index
    %c0_1 = arith.constant 0 : index
    %c0_2 = arith.constant 0 : index
    %0 = vector.load %arg1[%c0, %c0_0, %c0_1, %c0_2] : memref<1x16x16x243xbf16, #tpu.memory_space<vmem>>, vector<1x16x16x243xbf16>
    %1 = vector.shape_cast %0 : vector<1x16x16x243xbf16> to vector<16x16x243xbf16>
    %cst = arith.constant 0.000000e+00 : f32
    %2 = vector.broadcast %cst : f32 to vector<256x64xf32>
    %3 = vector.shape_cast %1 : vector<16x16x243xbf16> to vector<256x243xbf16>
    %c0_3 = arith.constant 0 : index
    %c0_4 = arith.constant 0 : index
    %c0_5 = arith.constant 0 : index
    %4 = vector.load %arg2[%c0_3, %c0_4, %c0_5] : memref<1x243x64xbf16, #tpu.memory_space<vmem>>, vector<1x243x64xbf16>
    %5 = vector.shape_cast %4 : vector<1x243x64xbf16> to vector<243x64xbf16>
    %cst_6 = arith.constant dense<0.000000e+00> : vector<256x64xf32>
    %6 = tpu.matmul %3, %5, %cst_6 {dimension_numbers = #tpu.dot_dimension_numbers<[1], [0], [0], [1], [0, 0, 1, 1], [], []>} : vector<256x243xbf16>, vector<243x64xbf16>, vector<256x64xf32> -> vector<256x64xf32>
    %7 = arith.addf %2, %6 : vector<256x64xf32>
    %c0_7 = arith.constant 0 : index
    %c0_8 = arith.constant 0 : index
    %8 = vector.load %arg3[%c0_7, %c0_8] : memref<1x64xf32, #tpu.memory_space<vmem>>, vector<1x64xf32>
    %9 = vector.broadcast %8 : vector<1x64xf32> to vector<256x64xf32>
    %10 = arith.addf %7, %9 : vector<256x64xf32>
    %11 = vector.shape_cast %10 : vector<256x64xf32> to vector<16x16x64xf32>
    %c0_9 = arith.constant 0 : index
    %c0_10 = arith.constant 0 : index
    %c0_11 = arith.constant 0 : index
    %c0_12 = arith.constant 0 : index
    %12 = vector.load %arg4[%c0_9, %c0_10, %c0_11, %c0_12] : memref<1x16x16x64xf32, #tpu.memory_space<vmem>>, vector<1x16x16x64xf32>
    %13 = vector.shape_cast %12 : vector<1x16x16x64xf32> to vector<16x16x64xf32>
    %14 = vector.shape_cast %11 : vector<16x16x64xf32> to vector<1x16x16x64xf32>
    tpu.vector_store %arg4[%c0_9, %c0_10, %c0_11, %c0_12], %14 {strides = array<i32>} : memref<1x16x16x64xf32, #tpu.memory_space<vmem>>, vector<1x16x16x64xf32>,
    return
  }
  func.func @transform_0(%arg0: i32) -> (i32, i32, i32, i32) {
    %c0_i32 = arith.constant 0 : i32
    %c0_i32_0 = arith.constant 0 : i32
    %c0_i32_1 = arith.constant 0 : i32
    %c0_i32_2 = arith.constant 0 : i32
    return %arg0, %c0_i32, %c0_i32_0, %c0_i32_1 : i32, i32, i32, i32
  }
  func.func @transform_1(%arg0: i32) -> (i32, i32, i32) {
    %c0_i32 = arith.constant 0 : i32
    %c0_i32_0 = arith.constant 0 : i32
    %c0_i32_1 = arith.constant 0 : i32
    %c0_i32_2 = arith.constant 0 : i32
    return %c0_i32, %c0_i32_0, %c0_i32_1 : i32, i32, i32
  }
  func.func @transform_2(%arg0: i32) -> (i32, i32) {
    %c0_i32 = arith.constant 0 : i32
    %c0_i32_0 = arith.constant 0 : i32
    %c0_i32_1 = arith.constant 0 : i32
    return %c0_i32, %c0_i32_0 : i32, i32
  }
  func.func @transform_3(%arg0: i32) -> (i32, i32, i32, i32) {
    %c0_i32 = arith.constant 0 : i32
    %c0_i32_0 = arith.constant 0 : i32
    %c0_i32_1 = arith.constant 0 : i32
    %c0_i32_2 = arith.constant 0 : i32
    return %arg0, %c0_i32, %c0_i32_0, %c0_i32_1 : i32, i32, i32, i32
  }
}

</mosaic_0001>

<llo_original>
// kernel: tpu_custom_call.1
$region0: #{tpu_custom_call.1}
  #allocation0 [shape = 'u32[]', space=smem, size = 0x4, offset = 0x4, fixed_abs, tag = 'smem constant byte address 0x4 - core index']
  #allocation1 [shape = 'u32[144,128]{1,0:T(1,128)}', space=vmem, size = 0x12000, scoped, tag = 'internal scratch']
  %s0 = inlined_call_operand.hbm [shape: bf16[2,16,16,243], index: 0, kind: input, shape index: {}]
  %s1 = inlined_call_operand.vmem [shape: bf16[1,243,64], index: 1, kind: input, shape index: {}]
  %s2 = inlined_call_operand.vmem [shape: f32[1,64], index: 2, kind: input, shape index: {}]
  %s3 = inlined_call_operand.hbm [shape: f32[2,16,16,64], index: 3, kind: output, shape index: {}]
  %s4 = sld [smem:[#allocation0]]
  $region49: #{tpu_custom_call.1} parent=0
    _
  %s6 = ssub.s32 1, %s4
  %s7 = scalar_select 0, %s6, %s4
  $region1: #{tpu_custom_call.1} parent=0
    #allocation2 [shape = 'u8[262144]{0}', space=vmem, size = 0x40000, scoped, tag = 'input window, operand 0']
    #allocation3 [shape = 's32[2]{0}', space=sflag, size = 0x8, scoped, tag = 'scoped memory for tpu_custom_call.1']
    #allocation4 [shape = 's32[2]{0}', space=sflag, size = 0x8, scoped, tag = 'scoped memory for tpu_custom_call.1']
    #allocation5 [shape = 'u8[262144]{0}', space=vmem, size = 0x40000, scoped, tag = 'output window, operand 0']
    %8 = vsyncpa [#allocation3], 0
    %s9 = scalar_lea.sflag [#allocation3], 1
    %10 = vsyncpa %s9, 0
    %11 = vsyncpa [#allocation4], 0
    %s12 = scalar_lea.sflag [#allocation4], 1
    %13 = vsyncpa %s12, 0
    loop: start=0, step=1, limit=4
    $region2: #{tpu_custom_call.1} parent=1 // loop_pre_header
      _
    $region3: #{tpu_custom_call.1} parent=1 // loop_header
      %s15 = sphi 0, %s19
      %p16 = scmp.ge.s32.totalorder %s15, 4
      %s25 = sphi 0, %s27
      %s28 = sphi 0, %s25
      %s29 = sphi 0, %s28
      %s45 = sphi 0, %s29
      %s49 = sphi 0, %s49
      %s51 = sphi 0, %s49
      %s52 = sphi 0, %s51
      %s66 = sphi 0, %s52
      %s70 = sphi 0, %s70
      %s72 = sphi 0, %s70
      %s73 = sphi 0, %s72
      %s87 = sphi 0, %s73
      %s93 = sphi 0, %s95
      %s96 = sphi 0, %s93
      %s97 = sphi 0, %s96
      %s113 = sphi 0, %s97
    $region4: #{tpu_custom_call.1} parent=1 // loop_header_branch
      %18 = sbr.rel (%p16) target = $region8
    $region5: #{tpu_custom_call.1} parent=1 // loop_body
      %s20 = ssub.s32 %s15, 1
      %s21 = ssub.s32 %s15, 2
      %s22 = sadd.s32 %s15, 1
      %s23 = ssub.s32 %s15, %s22
      %p24 = scmp.eq.s32.totalorder %s23, 0
      %s26 = sadd.s32 %s25, 1
      %s27 = scalar_select %p24, %s25, %s26
      %p30 = pneg %p24
      %p31 = scmp.eq.s32.totalorder %s15, 1
      %p32 = por %p30, %p31
      %p33 = scmp.ne.s32.totalorder %s25, %s28
      %p34 = scmp.eq.s32.totalorder %s15, 0
      %p35 = por %p33, %p34
      %p36 = scmp.ne.s32.totalorder %s25, %s28
      %p37 = scmp.eq.s32.totalorder %s20, 1
      %p38 = por %p36, %p37
      %p39 = scmp.ne.s32.totalorder %s28, %s29
      %p40 = scmp.eq.s32.totalorder %s20, 0
      %p41 = por %p39, %p40
      %p42 = scmp.ne.s32.totalorder %s28, %s29
      %p43 = scmp.eq.s32.totalorder %s21, 1
      %p44 = por %p42, %p43
      %p46 = scmp.ne.s32.totalorder %s29, %s45
      %p47 = scmp.eq.s32.totalorder %s21, 0
      %p48 = por %p46, %p47
      %s50 = sadd.s32 %s49, 1
      %p53 = scmp.eq.s32.totalorder %s15, 1
      %p54 = scmp.ne.s32.totalorder %s49, %s51
      %p55 = scmp.eq.s32.totalorder %s15, 0
      %p56 = por %p54, %p55
      %p57 = scmp.ne.s32.totalorder %s49, %s51
      %p58 = scmp.eq.s32.totalorder %s20, 1
      %p59 = por %p57, %p58
      %p60 = scmp.ne.s32.totalorder %s51, %s52
      %p61 = scmp.eq.s32.totalorder %s20, 0
      %p62 = por %p60, %p61
      %p63 = scmp.ne.s32.totalorder %s51, %s52
      %p64 = scmp.eq.s32.totalorder %s21, 1
      %p65 = por %p63, %p64
      %p67 = scmp.ne.s32.totalorder %s52, %s66
      %p68 = scmp.eq.s32.totalorder %s21, 0
      %p69 = por %p67, %p68
      %s71 = sadd.s32 %s70, 1
      %p74 = scmp.eq.s32.totalorder %s15, 1
      %p75 = scmp.ne.s32.totalorder %s70, %s72
      %p76 = scmp.eq.s32.totalorder %s15, 0
      %p77 = por %p75, %p76
      %p78 = scmp.ne.s32.totalorder %s70, %s72
      %p79 = scmp.eq.s32.totalorder %s20, 1
      %p80 = por %p78, %p79
      %p81 = scmp.ne.s32.totalorder %s72, %s73
      %p82 = scmp.eq.s32.totalorder %s20, 0
      %p83 = por %p81, %p82
      %p84 = scmp.ne.s32.totalorder %s72, %s73
      %p85 = scmp.eq.s32.totalorder %s21, 1
      %p86 = por %p84, %p85
      %p88 = scmp.ne.s32.totalorder %s73, %s87
      %p89 = scmp.eq.s32.totalorder %s21, 0
      %p90 = por %p88, %p89
      %s91 = ssub.s32 %s15, %s22
      %p92 = scmp.eq.s32.totalorder %s91, 0
      %s94 = sadd.s32 %s93, 1
      %s95 = scalar_select %p92, %s93, %s94
      %p98 = pneg %p92
      %p99 = scmp.eq.s32.totalorder %s15, 1
      %p100 = por %p98, %p99
      %p101 = scmp.ne.s32.totalorder %s93, %s96
      %p102 = scmp.eq.s32.totalorder %s15, 0
      %p103 = por %p101, %p102
      %p104 = scmp.ne.s32.totalorder %s93, %s96
      %p105 = scmp.eq.s32.totalorder %s20, 1
      %p106 = por %p104, %p105
      %p107 = scmp.ne.s32.totalorder %s96, %s97
      %p108 = scmp.eq.s32.totalorder %s20, 0
      %p109 = por %p107, %p108
      %p110 = scmp.ne.s32.totalorder %s96, %s97
      %p111 = scmp.eq.s32.totalorder %s21, 1
      %p112 = por %p110, %p111
      %p114 = scmp.ne.s32.totalorder %s97, %s113
      %p115 = scmp.eq.s32.totalorder %s21, 0
      %p116 = por %p114, %p115
      %p117 = scmp.le.s32.totalorder 1, %s15
      %p118 = scmp.lt.s32.totalorder %s15, 3
      %p119 = pnand %p117, %p118
      %p120 = pneg %p119
      // Predicated region
      $region9: #{tpu_custom_call.1} parent=5 // pred_check
        _
      $region10: #{tpu_custom_call.1} parent=5 // pred_check_branch
        %122 = sbr.rel (%p119) target = $region12
      $region11: #{tpu_custom_call.1} parent=5 // pred_region
        %s123 = ssub.s32 %s15, 1
        // Predicated region
        $region13: #{tpu_custom_call.1} parent=11 // pred_check
          %p124 = pneg %p62
        $region14: #{tpu_custom_call.1} parent=11 // pred_check_branch
          %126 = sbr.rel (%p124) target = $region16
        $region15: #{tpu_custom_call.1} parent=11 // pred_region
          _
        $region16: #{tpu_custom_call.1} parent=11 // pred_fallthru
          _
        // Predicated region
        $region17: #{tpu_custom_call.1} parent=11 // pred_check
          %p127 = pneg %p83
        $region18: #{tpu_custom_call.1} parent=11 // pred_check_branch
          %129 = sbr.rel (%p127) target = $region20
        $region19: #{tpu_custom_call.1} parent=11 // pred_region
          _
        $region20: #{tpu_custom_call.1} parent=11 // pred_fallthru
          _
      $region12: #{tpu_custom_call.1} parent=5 // pred_fallthru
        _
      %p130 = scmp.lt.s32.totalorder %s15, 2
      // Predicated region
      $region21: #{tpu_custom_call.1} parent=5 // pred_check
        %p131 = pneg %p130
      $region22: #{tpu_custom_call.1} parent=5 // pred_check_branch
        %133 = sbr.rel (%p131) target = $region24
      $region23: #{tpu_custom_call.1} parent=5 // pred_region
        // Predicated region
        $region25: #{tpu_custom_call.1} parent=23 // pred_check
          %p134 = pneg %p35
        $region26: #{tpu_custom_call.1} parent=23 // pred_check_branch
          %136 = sbr.rel (%p134) target = $region28
        $region27: #{tpu_custom_call.1} parent=23 // pred_region
          %s137 = sand.u32 %s25, 1
          %s138 = scalar_lea.sflag [#allocation3], %s137
          %s139 = sand.u32 %s25, 1
          %s140 = smul.addr %s139, 256
          %s141 = scalar_lea.vmem [#allocation2], %s140
          %s143 = ssub.s32 4096, 4096
          %144 = vsyncadd %s138, %s143
          %s145 = smul.addr %s15, 64
          %s146 = smul.addr %s145, 64
          %s147 = scalar_lea.hbm %s0, %s146
          %s148 = sshll.u32 %s141, 4
          %s149 = int_to_ptr.vmem [resolvable:$true] %s148
          %154 = dma.hbm_to_vmem [thread:$0]  %s147, 4096, %s149, %s138, 128, 128, 8
        $region28: #{tpu_custom_call.1} parent=23 // pred_fallthru
          _
      $region24: #{tpu_custom_call.1} parent=5 // pred_fallthru
        _
      %p155 = scmp.le.s32.totalorder 1, %s15
      %p156 = scmp.lt.s32.totalorder %s15, 3
      %p157 = pnand %p155, %p156
      %p158 = pneg %p157
      // Predicated region
      $region29: #{tpu_custom_call.1} parent=5 // pred_check
        _
      $region30: #{tpu_custom_call.1} parent=5 // pred_check_branch
        %160 = sbr.rel (%p157) target = $region32
      $region31: #{tpu_custom_call.1} parent=5 // pred_region
        %s161 = ssub.s32 %s15, 1
        %s162 = sand.u32 %s28, 1
        %s163 = scalar_lea.sflag [#allocation3], %s162
        %s164 = sand.u32 %s28, 1
        %s165 = smul.addr %s164, 256
        %s166 = scalar_lea.vmem [#allocation2], %s165
        // Predicated region
        $region33: #{tpu_custom_call.1} parent=31 // pred_check
          %p167 = pneg %p41
        $region34: #{tpu_custom_call.1} parent=31 // pred_check_branch
          %169 = sbr.rel (%p167) target = $region36
        $region35: #{tpu_custom_call.1} parent=31 // pred_region
          %170 = dma.done %s163, 4096
        $region36: #{tpu_custom_call.1} parent=31 // pred_fallthru
          _
        %s171 = sand.u32 %s28, 1
        %s172 = scalar_lea.sflag [#allocation3], %s171
        %s173 = sand.u32 %s28, 1
        %s174 = smul.addr %s173, 256
        %s175 = scalar_lea.vmem [#allocation2], %s174
        %p176 = pneg %p41
        %p177 = pneg %p38
        %p178 = pneg %p62
        %p179 = pneg %p59
        %p180 = pneg %p83
        %p181 = pneg %p80
        %p182 = pneg %p109
        %p183 = pneg %p106
        %s184 = sand.u32 %s96, 1
        %s185 = scalar_lea.sflag [#allocation4], %s184
        %s186 = sand.u32 %s96, 1
        %s187 = smul.addr %s186, 256
        %s188 = scalar_lea.vmem [#allocation5], %s187
        %v190 = vld [vmem:[%s166] sm:$0xff]
        %v191 = vld [vmem:[%s166 + $0x8] sm:$0xff]
        %v192 = vld [vmem:[%s166 + $0x10] sm:$0xff]
        %v193 = vld [vmem:[%s166 + $0x18] sm:$0xff]
        %v194 = vld [vmem:[%s166 + $0x20] sm:$0xff]
        %v195 = vld [vmem:[%s166 + $0x28] sm:$0xff]
        %v196 = vld [vmem:[%s166 + $0x30] sm:$0xff]
        %v197 = vld [vmem:[%s166 + $0x38] sm:$0xff]
        %v198 = vld [vmem:[%s166 + $0x40] sm:$0xff]
        %v199 = vld [vmem:[%s166 + $0x48] sm:$0xff]
        %v200 = vld [vmem:[%s166 + $0x50] sm:$0xff]
        %v201 = vld [vmem:[%s166 + $0x58] sm:$0xff]
        %v202 = vld [vmem:[%s166 + $0x60] sm:$0xff]
        %v203 = vld [vmem:[%s166 + $0x68] sm:$0xff]
        %v204 = vld [vmem:[%s166 + $0x70] sm:$0xff]
        %v205 = vld [vmem:[%s166 + $0x78] sm:$0xff]
        %v206 = vld [vmem:[%s166 + $0x80] sm:$0xff]
        %v207 = vld [vmem:[%s166 + $0x88] sm:$0xff]
        %v208 = vld [vmem:[%s166 + $0x90] sm:$0xff]
        %v209 = vld [vmem:[%s166 + $0x98] sm:$0xff]
        %v210 = vld [vmem:[%s166 + $0xa0] sm:$0xff]
        %v211 = vld [vmem:[%s166 + $0xa8] sm:$0xff]
        %v212 = vld [vmem:[%s166 + $0xb0] sm:$0xff]
        %v213 = vld [vmem:[%s166 + $0xb8] sm:$0xff]
        %v214 = vld [vmem:[%s166 + $0xc0] sm:$0xff]
        %v215 = vld [vmem:[%s166 + $0xc8] sm:$0xff]
        %v216 = vld [vmem:[%s166 + $0xd0] sm:$0xff]
        %v217 = vld [vmem:[%s166 + $0xd8] sm:$0xff]
        %v218 = vld [vmem:[%s166 + $0xe0] sm:$0xff]
        %v219 = vld [vmem:[%s166 + $0xe8] sm:$0xff]
        %v220 = vld [vmem:[%s166 + $0xf0] sm:$0xff]
        %v221 = vld [vmem:[%s166 + $0xf8] sm:$0xff]
        %v222 = vld [vmem:[%s1] sm:$0xf]
        %v223 = vld [vmem:[%s1 + $0x4] sm:$0xf]
        %v224 = vld [vmem:[%s1 + $0x8] sm:$0xf]
        %v225 = vld [vmem:[%s1 + $0xc] sm:$0xf]
        %v226 = vld [vmem:[%s1 + $0x10] sm:$0xf]
        %v227 = vld [vmem:[%s1 + $0x14] sm:$0xf]
        %v228 = vld [vmem:[%s1 + $0x18] sm:$0xf]
        %v229 = vld [vmem:[%s1 + $0x1c] sm:$0xf]
        %v230 = vld [vmem:[%s1 + $0x20] sm:$0xf]
        %v231 = vld [vmem:[%s1 + $0x24] sm:$0xf]
        %v232 = vld [vmem:[%s1 + $0x28] sm:$0xf]
        %v233 = vld [vmem:[%s1 + $0x2c] sm:$0xf]
        %v234 = vld [vmem:[%s1 + $0x30] sm:$0xf]
        %v235 = vld [vmem:[%s1 + $0x34] sm:$0xf]
        %v236 = vld [vmem:[%s1 + $0x38] sm:$0xf]
        %v237 = vld [vmem:[%s1 + $0x3c] sm:$0xf]
        %v238 = vld [vmem:[%s1 + $0x40] sm:$0xf]
        %v239 = vld [vmem:[%s1 + $0x44] sm:$0xf]
        %v240 = vld [vmem:[%s1 + $0x48] sm:$0xf]
        %v241 = vld [vmem:[%s1 + $0x4c] sm:$0xf]
        %v242 = vld [vmem:[%s1 + $0x50] sm:$0xf]
        %v243 = vld [vmem:[%s1 + $0x54] sm:$0xf]
        %v244 = vld [vmem:[%s1 + $0x58] sm:$0xf]
        %v245 = vld [vmem:[%s1 + $0x5c] sm:$0xf]
        %v246 = vld [vmem:[%s1 + $0x60] sm:$0xf]
        %v247 = vld [vmem:[%s1 + $0x64] sm:$0xf]
        %v248 = vld [vmem:[%s1 + $0x68] sm:$0xf]
        %v249 = vld [vmem:[%s1 + $0x6c] sm:$0xf]
        %v250 = vld [vmem:[%s1 + $0x70] sm:$0xf]
        %v251 = vld [vmem:[%s1 + $0x74] sm:$0xf]
        %v252 = vld [vmem:[%s1 + $0x78] sm:$0x3]
        %v253 = vld [vmem:[%s2] sm:$0x1]
        %v255 = vlaneseq
        %v256 = vshrl.u32 %v255, 7
        %v257 = vsub.s32 0, %v256
        %v258 = vrot.slane %v253, %v257
        %v292 = vunpack.c.l.b16 %v190
        %v293 = vunpack.c.h.b16 %v190
        %v294 = vunpack.c.l.b16 %v191
        %v295 = vunpack.c.h.b16 %v191
        %v296 = vunpack.c.l.b16 %v192
        %v297 = vunpack.c.h.b16 %v192
        %v298 = vunpack.c.l.b16 %v193
        %v299 = vunpack.c.h.b16 %v193
        %v300 = vunpack.c.l.b16 %v194
        %v301 = vunpack.c.h.b16 %v194
        %v302 = vunpack.c.l.b16 %v195
        %v303 = vunpack.c.h.b16 %v195
        %v304 = vunpack.c.l.b16 %v196
        %v305 = vunpack.c.h.b16 %v196
        %v306 = vunpack.c.l.b16 %v197
        %v307 = vunpack.c.h.b16 %v197
        %v308 = vunpack.c.l.b16 %v198
        %v309 = vunpack.c.h.b16 %v198
        %v310 = vunpack.c.l.b16 %v199
        %v311 = vunpack.c.h.b16 %v199
        %v312 = vunpack.c.l.b16 %v200
        %v313 = vunpack.c.h.b16 %v200
        %v314 = vunpack.c.l.b16 %v201
        %v315 = vunpack.c.h.b16 %v201
        %v316 = vunpack.c.l.b16 %v202
        %v317 = vunpack.c.h.b16 %v202
        %v318 = vunpack.c.l.b16 %v203
        %v319 = vunpack.c.h.b16 %v203
        %v320 = vunpack.c.l.b16 %v204
        %v321 = vunpack.c.h.b16 %v204
        %v322 = vunpack.c.l.b16 %v205
        %v323 = vunpack.c.h.b16 %v205
        %v324 = vunpack.c.l.b16 %v206
        %v325 = vunpack.c.h.b16 %v206
        %v326 = vunpack.c.l.b16 %v207
        %v327 = vunpack.c.h.b16 %v207
        %v328 = vunpack.c.l.b16 %v208
        %v329 = vunpack.c.h.b16 %v208
        %v330 = vunpack.c.l.b16 %v209
        %v331 = vunpack.c.h.b16 %v209
        %v332 = vunpack.c.l.b16 %v210
        %v333 = vunpack.c.h.b16 %v210
        %v334 = vunpack.c.l.b16 %v211
        %v335 = vunpack.c.h.b16 %v211
        %v336 = vunpack.c.l.b16 %v212
        %v337 = vunpack.c.h.b16 %v212
        %v338 = vunpack.c.l.b16 %v213
        %v339 = vunpack.c.h.b16 %v213
        %v340 = vunpack.c.l.b16 %v214
        %v341 = vunpack.c.h.b16 %v214
        %v342 = vunpack.c.l.b16 %v215
        %v343 = vunpack.c.h.b16 %v215
        %v344 = vunpack.c.l.b16 %v216
        %v345 = vunpack.c.h.b16 %v216
        %v346 = vunpack.c.l.b16 %v217
        %v347 = vunpack.c.h.b16 %v217
        %v348 = vunpack.c.l.b16 %v218
        %v349 = vunpack.c.h.b16 %v218
        %v350 = vunpack.c.l.b16 %v219
        %v351 = vunpack.c.h.b16 %v219
        %v352 = vunpack.c.l.b16 %v220
        %v353 = vunpack.c.h.b16 %v220
        %v354 = vunpack.c.l.b16 %v221
        %v355 = vunpack.c.h.b16 %v221
        %v356 = vpack.c.b16 %v294, %v292
        %v357 = vpack.c.b16 %v295, %v293
        %v358 = vpack.c.b16 %v298, %v296
        %v359 = vpack.c.b16 %v299, %v297
        %v360 = vpack.c.b16 %v302, %v300
        %v361 = vpack.c.b16 %v303, %v301
        %v362 = vpack.c.b16 %v306, %v304
        %v363 = vpack.c.b16 %v307, %v305
        %v364 = vpack.c.b16 %v310, %v308
        %v365 = vpack.c.b16 %v311, %v309
        %v366 = vpack.c.b16 %v314, %v312
        %v367 = vpack.c.b16 %v315, %v313
        %v368 = vpack.c.b16 %v318, %v316
        %v369 = vpack.c.b16 %v319, %v317
        %v370 = vpack.c.b16 %v322, %v320
        %v371 = vpack.c.b16 %v323, %v321
        %v372 = vpack.c.b16 %v326, %v324
        %v373 = vpack.c.b16 %v327, %v325
        %v374 = vpack.c.b16 %v330, %v328
        %v375 = vpack.c.b16 %v331, %v329
        %v376 = vpack.c.b16 %v334, %v332
        %v377 = vpack.c.b16 %v335, %v333
        %v378 = vpack.c.b16 %v338, %v336
        %v379 = vpack.c.b16 %v339, %v337
        %v380 = vpack.c.b16 %v342, %v340
        %v381 = vpack.c.b16 %v343, %v341
        %v382 = vpack.c.b16 %v346, %v344
        %v383 = vpack.c.b16 %v347, %v345
        %v384 = vpack.c.b16 %v350, %v348
        %v385 = vpack.c.b16 %v351, %v349
        %v386 = vpack.c.b16 %v354, %v352
        %v387 = vpack.c.b16 %v355, %v353
        %v435 = vunpack.c.l.b16 %v222
        %v436 = vunpack.c.l.b16 %v223
        %v437 = vunpack.c.l.b16 %v224
        %v438 = vunpack.c.l.b16 %v225
        %v439 = vunpack.c.l.b16 %v226
        %v440 = vunpack.c.l.b16 %v227
        %v441 = vunpack.c.l.b16 %v228
        %v442 = vunpack.c.l.b16 %v229
        %v443 = vunpack.c.l.b16 %v230
        %v444 = vunpack.c.l.b16 %v231
        %v445 = vunpack.c.l.b16 %v232
        %v446 = vunpack.c.l.b16 %v233
        %v447 = vunpack.c.l.b16 %v234
        %v448 = vunpack.c.l.b16 %v235
        %v449 = vunpack.c.l.b16 %v236
        %v450 = vunpack.c.l.b16 %v237
        %v451 = vunpack.c.l.b16 %v238
        %v452 = vunpack.c.l.b16 %v239
        %v453 = vunpack.c.l.b16 %v240
        %v454 = vunpack.c.l.b16 %v241
        %v455 = vunpack.c.l.b16 %v242
        %v456 = vunpack.c.l.b16 %v243
        %v457 = vunpack.c.l.b16 %v244
        %v458 = vunpack.c.l.b16 %v245
        %v459 = vunpack.c.l.b16 %v246
        %v460 = vunpack.c.l.b16 %v247
        %v461 = vunpack.c.l.b16 %v248
        %v462 = vunpack.c.l.b16 %v249
        %v463 = vunpack.c.l.b16 %v250
        %v464 = vunpack.c.l.b16 %v251
        %v465 = vunpack.c.l.b16 %v252
        %v466 = vpack.c.b16 %v436, %v435
        %v467 = vpack.c.b16 %v438, %v437
        %v468 = vpack.c.b16 %v440, %v439
        %v469 = vpack.c.b16 %v442, %v441
        %v470 = vpack.c.b16 %v444, %v443
        %v471 = vpack.c.b16 %v446, %v445
        %v472 = vpack.c.b16 %v448, %v447
        %v473 = vpack.c.b16 %v450, %v449
        %v474 = vpack.c.b16 %v452, %v451
        %v475 = vpack.c.b16 %v454, %v453
        %v476 = vpack.c.b16 %v456, %v455
        %v477 = vpack.c.b16 %v458, %v457
        %v478 = vpack.c.b16 %v460, %v459
        %v479 = vpack.c.b16 %v462, %v461
        %v480 = vpack.c.b16 %v464, %v463
        %v481 = vpack.c.b16 %v465, %v465
        %vm497 = vcmask 941056
        %v499 = vsel %vm497, %v357, 0
        %v502 = vsel %vm497, %v359, 0
        %v505 = vsel %vm497, %v361, 0
        %v508 = vsel %vm497, %v363, 0
        %v511 = vsel %vm497, %v365, 0
        %v514 = vsel %vm497, %v367, 0
        %v517 = vsel %vm497, %v369, 0
        %v520 = vsel %vm497, %v371, 0
        %v523 = vsel %vm497, %v373, 0
        %v526 = vsel %vm497, %v375, 0
        %v529 = vsel %vm497, %v377, 0
        %v532 = vsel %vm497, %v379, 0
        %v535 = vsel %vm497, %v381, 0
        %v538 = vsel %vm497, %v383, 0
        %v541 = vsel %vm497, %v385, 0
        %v544 = vsel %vm497, %v387, 0
        %vm546 = vcmask 1040384
        %vm547 = vcmask 1041408
        %v548 = vsel %vm546, 4294967295, 65535
        %v549 = vsel %vm547, %v548, 0
        %v551 = vand.u32 %v481, %v549
        %553 = vmatprep.subr.bf16.mxu0 0
        %554 = vmatpush1.bf16.msra.mxu0 %v466
        %555 = vmatprep.subr.bf16.mxu0 0
        %556 = vmatpush1.bf16.msra.mxu0 %v467
        %557 = vmatprep.subr.bf16.mxu0 0
        %558 = vmatpush1.bf16.msra.mxu0 %v468
        %559 = vmatprep.subr.bf16.mxu0 0
        %560 = vmatpush1.bf16.msra.mxu0 %v469
        %561 = vmatprep.subr.bf16.mxu0 0
        %562 = vmatpush1.bf16.msra.mxu0 %v470
        %563 = vmatprep.subr.bf16.mxu0 0
        %564 = vmatpush1.bf16.msra.mxu0 %v471
        %565 = vmatprep.subr.bf16.mxu0 0
        %566 = vmatpush1.bf16.msra.mxu0 %v472
        %567 = vmatprep.subr.bf16.mxu0 0
        %568 = vmatpush1.bf16.msra.mxu0 %v473
        %569 = vmatprep.subr.bf16.mxu0 0
        %570 = vmatpush1.bf16.msra.mxu0 %v474
        %571 = vmatprep.subr.bf16.mxu0 0
        %572 = vmatpush1.bf16.msra.mxu0 %v475
        %573 = vmatprep.subr.bf16.mxu0 0
        %574 = vmatpush1.bf16.msra.mxu0 %v476
        %575 = vmatprep.subr.bf16.mxu0 0
        %576 = vmatpush1.bf16.msra.mxu0 %v477
        %577 = vmatprep.subr.bf16.mxu0 0
        %578 = vmatpush1.bf16.msra.mxu0 %v478
        %579 = vmatprep.subr.bf16.mxu0 0
        %580 = vmatpush1.bf16.msra.mxu0 %v479
        %581 = vmatprep.subr.bf16.mxu0 0
        %582 = vmatpush1.bf16.msra.mxu0 %v480
        %583 = vmatprep.subr.bf16.mxu0 0
        %584 = vmatpush1.bf16.msra.mxu0 %v551
        %585 = vmatprep.mubr.bf16.mxu0 %v499
        %586 = vmatmul.mubr.bf16.gmra.mrb[0].mxu0 %v356
        %v587 = vpop.f32.mrb[0].mxu0
        %v588 = vadd.f32 %v258, %v587
        %v589 = vpop.f32.mrb[0].mxu0
        %v590 = vpop.f32.mrb[0].mxu0
        %v591 = vadd.f32 %v258, %v590
        %v592 = vpop.f32.mrb[0].mxu0
        %593 = vmatprep.mubr.bf16.mxu0 %v502
        %594 = vmatmul.mubr.bf16.gmra.mrb[0].mxu0 %v358
        %v595 = vpop.f32.mrb[0].mxu0
        %v596 = vadd.f32 %v258, %v595
        %v597 = vpop.f32.mrb[0].mxu0
        %v598 = vpop.f32.mrb[0].mxu0
        %v599 = vadd.f32 %v258, %v598
        %v600 = vpop.f32.mrb[0].mxu0
        %601 = vmatprep.mubr.bf16.mxu0 %v505
        %602 = vmatmul.mubr.bf16.gmra.mrb[0].mxu0 %v360
        %v603 = vpop.f32.mrb[0].mxu0
        %v604 = vadd.f32 %v258, %v603
        %v605 = vpop.f32.mrb[0].mxu0
        %v606 = vpop.f32.mrb[0].mxu0
        %v607 = vadd.f32 %v258, %v606
        %v608 = vpop.f32.mrb[0].mxu0
        %609 = vmatprep.mubr.bf16.mxu0 %v508
        %610 = vmatmul.mubr.bf16.gmra.mrb[0].mxu0 %v362
        %v611 = vpop.f32.mrb[0].mxu0
        %v612 = vadd.f32 %v258, %v611
        %v613 = vpop.f32.mrb[0].mxu0
        %v614 = vpop.f32.mrb[0].mxu0
        %v615 = vadd.f32 %v258, %v614
        %v616 = vpop.f32.mrb[0].mxu0
        %617 = vmatprep.mubr.bf16.mxu0 %v511
        %618 = vmatmul.mubr.bf16.gmra.mrb[0].mxu0 %v364
        %v619 = vpop.f32.mrb[0].mxu0
        %v620 = vadd.f32 %v258, %v619
        %v621 = vpop.f32.mrb[0].mxu0
        %v622 = vpop.f32.mrb[0].mxu0
        %v623 = vadd.f32 %v258, %v622
        %v624 = vpop.f32.mrb[0].mxu0
        %625 = vmatprep.mubr.bf16.mxu0 %v514
        %626 = vmatmul.mubr.bf16.gmra.mrb[0].mxu0 %v366
        %v627 = vpop.f32.mrb[0].mxu0
        %v628 = vadd.f32 %v258, %v627
        %v629 = vpop.f32.mrb[0].mxu0
        %v630 = vpop.f32.mrb[0].mxu0
        %v631 = vadd.f32 %v258, %v630
        %v632 = vpop.f32.mrb[0].mxu0
        %633 = vmatprep.mubr.bf16.mxu0 %v517
        %634 = vmatmul.mubr.bf16.gmra.mrb[0].mxu0 %v368
        %v635 = vpop.f32.mrb[0].mxu0
        %v636 = vadd.f32 %v258, %v635
        %v637 = vpop.f32.mrb[0].mxu0
        %v638 = vpop.f32.mrb[0].mxu0
        %v639 = vadd.f32 %v258, %v638
        %v640 = vpop.f32.mrb[0].mxu0
        %641 = vmatprep.mubr.bf16.mxu0 %v520
        %642 = vmatmul.mubr.bf16.gmra.mrb[0].mxu0 %v370
        %v643 = vpop.f32.mrb[0].mxu0
        %v644 = vadd.f32 %v258, %v643
        %v645 = vpop.f32.mrb[0].mxu0
        %v646 = vpop.f32.mrb[0].mxu0
        %v647 = vadd.f32 %v258, %v646
        %v648 = vpop.f32.mrb[0].mxu0
        %649 = vmatprep.mubr.bf16.mxu0 %v523
        %650 = vmatmul.mubr.bf16.gmra.mrb[0].mxu0 %v372
        %v651 = vpop.f32.mrb[0].mxu0
        %v652 = vadd.f32 %v258, %v651
        %v653 = vpop.f32.mrb[0].mxu0
        %v654 = vpop.f32.mrb[0].mxu0
        %v655 = vadd.f32 %v258, %v654
        %v656 = vpop.f32.mrb[0].mxu0
        %657 = vmatprep.mubr.bf16.mxu0 %v526
        %658 = vmatmul.mubr.bf16.gmra.mrb[0].mxu0 %v374
        %v659 = vpop.f32.mrb[0].mxu0
        %v660 = vadd.f32 %v258, %v659
        %v661 = vpop.f32.mrb[0].mxu0
        %v662 = vpop.f32.mrb[0].mxu0
        %v663 = vadd.f32 %v258, %v662
        %v664 = vpop.f32.mrb[0].mxu0
        %665 = vmatprep.mubr.bf16.mxu0 %v529
        %666 = vmatmul.mubr.bf16.gmra.mrb[0].mxu0 %v376
        %v667 = vpop.f32.mrb[0].mxu0
        %v668 = vadd.f32 %v258, %v667
        %v669 = vpop.f32.mrb[0].mxu0
        %v670 = vpop.f32.mrb[0].mxu0
        %v671 = vadd.f32 %v258, %v670
        %v672 = vpop.f32.mrb[0].mxu0
        %673 = vmatprep.mubr.bf16.mxu0 %v532
        %674 = vmatmul.mubr.bf16.gmra.mrb[0].mxu0 %v378
        %v675 = vpop.f32.mrb[0].mxu0
        %v676 = vadd.f32 %v258, %v675
        %v677 = vpop.f32.mrb[0].mxu0
        %v678 = vpop.f32.mrb[0].mxu0
        %v679 = vadd.f32 %v258, %v678
        %v680 = vpop.f32.mrb[0].mxu0
        %681 = vmatprep.mubr.bf16.mxu0 %v535
        %682 = vmatmul.mubr.bf16.gmra.mrb[0].mxu0 %v380
        %v683 = vpop.f32.mrb[0].mxu0
        %v684 = vadd.f32 %v258, %v683
        %v685 = vpop.f32.mrb[0].mxu0
        %v686 = vpop.f32.mrb[0].mxu0
        %v687 = vadd.f32 %v258, %v686
        %v688 = vpop.f32.mrb[0].mxu0
        %689 = vmatprep.mubr.bf16.mxu0 %v538
        %690 = vmatmul.mubr.bf16.gmra.mrb[0].mxu0 %v382
        %v691 = vpop.f32.mrb[0].mxu0
        %v692 = vadd.f32 %v258, %v691
        %v693 = vpop.f32.mrb[0].mxu0
        %v694 = vpop.f32.mrb[0].mxu0
        %v695 = vadd.f32 %v258, %v694
        %v696 = vpop.f32.mrb[0].mxu0
        %697 = vmatprep.mubr.bf16.mxu0 %v541
        %698 = vmatmul.mubr.bf16.gmra.mrb[0].mxu0 %v384
        %v699 = vpop.f32.mrb[0].mxu0
        %v700 = vadd.f32 %v258, %v699
        %v701 = vpop.f32.mrb[0].mxu0
        %v702 = vpop.f32.mrb[0].mxu0
        %v703 = vadd.f32 %v258, %v702
        %v704 = vpop.f32.mrb[0].mxu0
        %705 = vmatprep.mubr.bf16.mxu0 %v544
        %706 = vmatmul.mubr.bf16.gmra.mrb[0].mxu0 %v386
        %v707 = vpop.f32.mrb[0].mxu0
        %v708 = vadd.f32 %v258, %v707
        %v709 = vpop.f32.mrb[0].mxu0
        %v710 = vpop.f32.mrb[0].mxu0
        %v711 = vadd.f32 %v258, %v710
        %v712 = vpop.f32.mrb[0].mxu0
        %713 = vdwg.mxu0
        %vm714 = vcmask 523264
        %715 = vst.msk [vmem:[%s188] sm:$0xff] %vm714, %v588
        %716 = vst.msk [vmem:[%s188 + $0x8] sm:$0xff] %vm714, %v591
        %717 = vst.msk [vmem:[%s188 + $0x10] sm:$0xff] %vm714, %v596
        %718 = vst.msk [vmem:[%s188 + $0x18] sm:$0xff] %vm714, %v599
        %719 = vst.msk [vmem:[%s188 + $0x20] sm:$0xff] %vm714, %v604
        %720 = vst.msk [vmem:[%s188 + $0x28] sm:$0xff] %vm714, %v607
        %721 = vst.msk [vmem:[%s188 + $0x30] sm:$0xff] %vm714, %v612
        %722 = vst.msk [vmem:[%s188 + $0x38] sm:$0xff] %vm714, %v615
        %723 = vst.msk [vmem:[%s188 + $0x40] sm:$0xff] %vm714, %v620
        %724 = vst.msk [vmem:[%s188 + $0x48] sm:$0xff] %vm714, %v623
        %725 = vst.msk [vmem:[%s188 + $0x50] sm:$0xff] %vm714, %v628
        %726 = vst.msk [vmem:[%s188 + $0x58] sm:$0xff] %vm714, %v631
        %727 = vst.msk [vmem:[%s188 + $0x60] sm:$0xff] %vm714, %v636
        %728 = vst.msk [vmem:[%s188 + $0x68] sm:$0xff] %vm714, %v639
        %729 = vst.msk [vmem:[%s188 + $0x70] sm:$0xff] %vm714, %v644
        %730 = vst.msk [vmem:[%s188 + $0x78] sm:$0xff] %vm714, %v647
        %731 = vst.msk [vmem:[%s188 + $0x80] sm:$0xff] %vm714, %v652
        %732 = vst.msk [vmem:[%s188 + $0x88] sm:$0xff] %vm714, %v655
        %733 = vst.msk [vmem:[%s188 + $0x90] sm:$0xff] %vm714, %v660
        %734 = vst.msk [vmem:[%s188 + $0x98] sm:$0xff] %vm714, %v663
        %735 = vst.msk [vmem:[%s188 + $0xa0] sm:$0xff] %vm714, %v668
        %736 = vst.msk [vmem:[%s188 + $0xa8] sm:$0xff] %vm714, %v671
        %737 = vst.msk [vmem:[%s188 + $0xb0] sm:$0xff] %vm714, %v676
        %738 = vst.msk [vmem:[%s188 + $0xb8] sm:$0xff] %vm714, %v679
        %739 = vst.msk [vmem:[%s188 + $0xc0] sm:$0xff] %vm714, %v684
        %740 = vst.msk [vmem:[%s188 + $0xc8] sm:$0xff] %vm714, %v687
        %741 = vst.msk [vmem:[%s188 + $0xd0] sm:$0xff] %vm714, %v692
        %742 = vst.msk [vmem:[%s188 + $0xd8] sm:$0xff] %vm714, %v695
        %743 = vst.msk [vmem:[%s188 + $0xe0] sm:$0xff] %vm714, %v700
        %744 = vst.msk [vmem:[%s188 + $0xe8] sm:$0xff] %vm714, %v703
        %745 = vst.msk [vmem:[%s188 + $0xf0] sm:$0xff] %vm714, %v708
        %746 = vst.msk [vmem:[%s188 + $0xf8] sm:$0xff] %vm714, %v711
        %s747 = sand.u32 %s96, 1
        %s748 = scalar_lea.sflag [#allocation4], %s747
        %s749 = sand.u32 %s96, 1
        %s750 = smul.addr %s749, 256
        %s751 = scalar_lea.vmem [#allocation5], %s750
        // Predicated region
        $region37: #{tpu_custom_call.1} parent=31 // pred_check
          %p752 = pneg %p106
        $region38: #{tpu_custom_call.1} parent=31 // pred_check_branch
          %754 = sbr.rel (%p752) target = $region40
        $region39: #{tpu_custom_call.1} parent=31 // pred_region
          %s756 = ssub.s32 4096, 4096
          %757 = vsyncadd %s748, %s756
          %s758 = smul.addr %s20, 32
          %s759 = smul.addr %s758, 128
          %s760 = scalar_lea.hbm %s3, %s759
          %s761 = sshll.u32 %s751, 4
          %s762 = int_to_ptr.vmem [resolvable:$true] %s761
          %767 = dma.vmem_to_hbm [thread:$0]  %s762, 4096, %s760, %s748, 128, 128, 8
        $region40: #{tpu_custom_call.1} parent=31 // pred_fallthru
          _
      $region32: #{tpu_custom_call.1} parent=5 // pred_fallthru
        _
      %p768 = scmp.le.s32.totalorder 2, %s15
      // Predicated region
      $region41: #{tpu_custom_call.1} parent=5 // pred_check
        %p769 = pneg %p768
      $region42: #{tpu_custom_call.1} parent=5 // pred_check_branch
        %771 = sbr.rel (%p769) target = $region44
      $region43: #{tpu_custom_call.1} parent=5 // pred_region
        %s772 = ssub.s32 %s15, 2
        // Predicated region
        $region45: #{tpu_custom_call.1} parent=43 // pred_check
          %p773 = pneg %p112
        $region46: #{tpu_custom_call.1} parent=43 // pred_check_branch
          %775 = sbr.rel (%p773) target = $region48
        $region47: #{tpu_custom_call.1} parent=43 // pred_region
          %s776 = sand.u32 %s97, 1
          %s777 = scalar_lea.sflag [#allocation4], %s776
          %s778 = sand.u32 %s97, 1
          %s779 = smul.addr %s778, 256
          %s780 = scalar_lea.vmem [#allocation5], %s779
          %781 = dma.done %s777, 4096
        $region48: #{tpu_custom_call.1} parent=43 // pred_fallthru
          _
      $region44: #{tpu_custom_call.1} parent=5 // pred_fallthru
        _
    $region6: #{tpu_custom_call.1} parent=1 // loop_footer
      %s19 = sadd.s32 1, %s15
    $region7: #{tpu_custom_call.1} parent=1 // loop_footer_branch
      %14 = sbr.rel target = $region3
    $region8: #{tpu_custom_call.1} parent=1 // loop_exit
      _
    %782 = vsyncpa [#allocation3], 1
    %s783 = scalar_lea.sflag [#allocation3], 1
    %784 = vsyncpa %s783, 1
    %785 = vsyncpa [#allocation4], 1
    %s786 = scalar_lea.sflag [#allocation4], 1
    %787 = vsyncpa %s786, 1

</llo_original>
